<compile_context>
chip_gen: v5e
topology: v5e:2x2
jax: 0.10.0
libtpu: 0.0.40
codegen_flags: <defaults>
</compile_context>

<pallas_src>
import functools

import jax
import jax.numpy as jnp
from jax.experimental import pallas as pl
from jax.experimental.pallas import tpu as pltpu

_LANES = 128
_SUBLANES = 8
_MIB = 1024 * 1024
_MAX_BATCH_BLOCK = 1024          # default cap on batch rows per block


def _budgets():
    """Returns (per-step input-bytes target, f32-temporaries budget, vmem limit)."""
    try:
        cap = getattr(pltpu.get_tpu_info(), "vmem_capacity_bytes", 0) or 0
    except Exception:  # API unavailable / non-TPU tracing -> stay conservative
        cap = 0
    if cap >= 100 * _MIB:                      # v5e / v6e: 128 MiB VMEM
        return 16 * _MIB, 32 * _MIB, 96 * _MIB
    return 6 * _MIB, 12 * _MIB, 48 * _MIB      # v7x (64 MiB per TC) / unknown


def _soft_dice_partials_kernel(logits_ref, targets_ref,
                               inter_ref, m1_ref, m2_ref,
                               *, k_grid, s_tile, d_valid):
    """Accumulate per-batch-row partial sums of p*t, p, t (p = sigmoid(x)).

    logits_ref / targets_ref : (n_tile, s_tile, 128) streamed input block.
    inter/m1/m2 refs         : (1, n_tile, 128) lane-dense f32 accumulators,
                               resident across the k (streaming) grid axis.
    """
    p_id = pl.program_id(1)
    k_id = pl.program_id(2)

    @pl.when(k_id == 0)
    def _init():
        inter_ref[...] = jnp.zeros_like(inter_ref)
        m1_ref[...] = jnp.zeros_like(m1_ref)
        m2_ref[...] = jnp.zeros_like(m2_ref)

    x = logits_ref[...].astype(jnp.float32)
    y = targets_ref[...].astype(jnp.float32)
    prob = jax.nn.sigmoid(x)

    # Flat element range covered by this block.  Uses the *unclamped* grid
    # position, so a rounded-up extra block (whose index_map was clamped
    # in-bounds) masks to exactly zero.
    row_start = (p_id * k_grid + k_id) * s_tile
    block_end = (row_start + s_tile) * _LANES

    def _accum(pv, yv):
        # Sublane-axis reduce only: (n, s_tile, 128) -> (n, 128).  Pure vreg
        # adds plus a single 8-sublane tail reduce; no per-step cross-lane work
        # and the accumulators stay lane-dense.
        inter_ref[...] += jnp.sum(pv * yv, axis=1)[None]
        m1_ref[...] += jnp.sum(pv, axis=1)[None]
        m2_ref[...] += jnp.sum(yv, axis=1)[None]

    @pl.when(block_end <= d_valid)
    def _interior():                      # hot path: no masking work at all
        _accum(prob, y)

    @pl.when(block_end > d_valid)
    def _tail():                          # block straddles / exceeds the end
        rows = jax.lax.broadcasted_iota(jnp.int32, x.shape, 1)
        lanes = jax.lax.broadcasted_iota(jnp.int32, x.shape, 2)
        flat = (row_start + rows) * _LANES + lanes
        valid = flat < d_valid
        _accum(jnp.where(valid, prob, 0.0), jnp.where(valid, y, 0.0))


def soft_dice_loss(logits, targets, smooth=1.0, *,
                   step_bytes=None, max_batch_block=_MAX_BATCH_BLOCK):
    """SoftDiceLoss.forward: logits/targets of shape (N, ...) -> f32 scalar.

    Narrow HBM dtypes (bf16 logits, bf16/int8 {0,1} targets) are accepted and
    proportionally reduce HBM traffic for this bandwidth-bound kernel.
    """
    n = logits.shape[0]
    logits2d = logits.reshape(n, -1)
    targets2d = targets.reshape(n, -1)
    d = logits2d.shape[1]

    dma_target, f32_tmp_budget, vmem_limit = _budgets()
    if step_bytes is not None:
        dma_target = step_bytes

    # ---- batch (N) tiling: guard very large batches --------------------------
    if n <= max_batch_block:
        n_tile, n_grid = n, 1
    else:
        n_tile = max(_SUBLANES, (max_batch_block // _SUBLANES) * _SUBLANES)
        n_grid = pl.cdiv(n, n_tile)
    n_out = n_grid * n_tile

    # ---- feature (S) tiling: dtype-aware bytes/step, bounded f32 temps -------
    bpe_l = jnp.dtype(logits.dtype).itemsize
    bpe_t = jnp.dtype(targets.dtype).itemsize
    sub_align = max(_SUBLANES, 32 // max(1, min(bpe_l, bpe_t)))  # packed sublanes

    s_total = pl.cdiv(d, _LANES)                     # rows of 128 lanes
    elems = min(dma_target // (bpe_l + bpe_t),       # HBM bytes per grid step
                f32_tmp_budget // 16)                # ~4 live f32 temporaries
    s_tile = max(sub_align,
                 (elems // (n_tile * _LANES)) // sub_align * sub_align)

    if s_tile >= s_total:
        # One block covers everything (block dim == full array dim is legal
        # even when it is not a multiple of the sublane alignment).
        s_tile, p_grid, k_grid = s_total, 1, 1
    else:
        total_tiles = pl.cdiv(s_total, s_tile)
        # Always expose a 2-way "parallel" split (v7x megacore).  Odd counts
        # are rounded up; the extra block is clamped in-bounds + fully masked.
        p_grid = 2
        k_grid = pl.cdiv(total_tiles, 2)
    last_block = pl.cdiv(s_total, s_tile) - 1

    # ---- lane padding only (no-op in the common C*H*W % 128 == 0 case) -------
    d_pad = s_total * _LANES
    if d_pad != d:
        logits2d = jnp.pad(logits2d, ((0, 0), (0, d_pad - d)))
        targets2d = jnp.pad(targets2d, ((0, 0), (0, d_pad - d)))
    logits3d = logits2d.reshape(n, s_total, _LANES)
    targets3d = targets2d.reshape(n, s_total, _LANES)

    in_block = (n_tile, s_tile, _LANES)

    def in_map(b, p, k):
        # Clamp so a rounded-up extra block stays in bounds (its contribution
        # is masked to zero inside the kernel).
        return (b, jnp.minimum(p * k_grid + k, last_block), 0)

    out_spec = pl.BlockSpec((1, n_tile, _LANES), lambda b, p, k: (p, b, 0))
    part_shape = jax.ShapeDtypeStruct((p_grid, n_out, _LANES), jnp.float32)

    kernel = functools.partial(_soft_dice_partials_kernel,
                               k_grid=k_grid, s_tile=s_tile, d_valid=d)
    inter_p, m1_p, m2_p = pl.pallas_call(
        kernel,
        out_shape=(part_shape, part_shape, part_shape),
        grid_spec=pltpu.PrefetchScalarGridSpec(
            num_scalar_prefetch=0,
            grid=(n_grid, p_grid, k_grid),
            in_specs=[pl.BlockSpec(in_block, in_map),
                      pl.BlockSpec(in_block, in_map)],
            out_specs=(out_spec, out_spec, out_spec),
        ),
        compiler_params=pltpu.CompilerParams(
            dimension_semantics=("parallel", "parallel", "arbitrary"),
            vmem_limit_bytes=vmem_limit,
        ),
    )(logits3d, targets3d)

    # Tiny O(N * 128) finalize in plain JAX: fold cores + lanes, then score.
    inter = jnp.sum(inter_p, axis=(0, 2))[:n]
    m1 = jnp.sum(m1_p, axis=(0, 2))[:n]
    m2 = jnp.sum(m2_p, axis=(0, 2))[:n]
    score = 2.0 * (inter + smooth) / (m1 + m2 + smooth)
    return 1.0 - jnp.sum(score) / n


def _reference(logits, targets, smooth=1.0):
    n = logits.shape[0]
    p = jax.nn.sigmoid(logits.astype(jnp.float32)).reshape(n, -1)
    t = targets.astype(jnp.float32).reshape(n, -1)
    inter = jnp.sum(p * t, axis=1)
    score = 2.0 * (inter + smooth) / (jnp.sum(p, axis=1) + jnp.sum(t, axis=1) + smooth)
    return 1.0 - jnp.sum(score) / n


if __name__ == "__main__":
    key = jax.random.PRNGKey(0)
    keys = jax.random.split(key, 10)

    def _check(lg, tg, **kw):
        got = jax.block_until_ready(soft_dice_loss(lg, tg, smooth=1.0, **kw))
        want = _reference(lg, tg, smooth=1.0)
        assert jnp.allclose(got, want, atol=1e-5, rtol=1e-5), (got, want)

    # 1) Primary small NCHW test (single-block fast path, d % 128 == 0).
    logits = jax.random.normal(keys[0], (2, 4, 16, 16), dtype=jnp.float32)
    targets = (jax.random.uniform(keys[1], (2, 4, 16, 16)) > 0.5).astype(jnp.float32)
    _check(logits, targets)

    # 2) Multi-tile streaming + even 2-way core split (forced tiny step budget).
    logits_b = jax.random.normal(keys[2], (2, 4, 32, 32), dtype=jnp.float32)
    targets_b = (jax.random.uniform(keys[3], (2, 4, 32, 32)) > 0.5).astype(jnp.float32)
    _check(logits_b, targets_b, step_bytes=16 * 1024)

    # 3) Odd tile count -> rounded-up grid with a clamped, fully-masked block.
    logits_c = jax.random.normal(keys[4], (2, 3, 32, 32), dtype=jnp.float32)
    targets_c = (jax.random.uniform(keys[5], (2, 3, 32, 32)) > 0.5).astype(jnp.float32)
    _check(logits_c, targets_c, step_bytes=16 * 1024)

    # 4) Ragged feature dim (d % 128 != 0): lane-tail pad + in-kernel mask.
    logits_d = jax.random.normal(keys[6], (2, 3, 20, 20), dtype=jnp.float32)
    targets_d = (jax.random.uniform(keys[7], (2, 3, 20, 20)) > 0.5).astype(jnp.float32)
    _check(logits_d, targets_d, step_bytes=16 * 1024)

    # 5) Batch-tiling guard (n > max_batch_block) + narrow target dtype.
    logits_e = jax.random.normal(keys[8], (10, 4, 16, 16), dtype=jnp.float32)
    targets_e = (jax.random.uniform(keys[9], (10, 4, 16, 16)) > 0.5).astype(jnp.bfloat16)
    _check(logits_e, targets_e, max_batch_block=8)

    print("KERNEL_OK")
</pallas_src>

<mosaic_0001>
module attributes {stable_mosaic.version = 11 : i64} {
  func.func @_soft_dice_partials_kernel(%arg0: i32, %arg1: i32, %arg2: i32, %arg3: memref<2x8x128xf32, #tpu.memory_space<vmem>>, %arg4: memref<2x8x128xf32, #tpu.memory_space<vmem>>, %arg5: memref<1x2x128xf32, #tpu.memory_space<vmem>>, %arg6: memref<1x2x128xf32, #tpu.memory_space<vmem>>, %arg7: memref<1x2x128xf32, #tpu.memory_space<vmem>>) attributes {dimension_semantics = [#tpu.dimension_semantics<parallel>, #tpu.dimension_semantics<parallel>, #tpu.dimension_semantics<arbitrary>], iteration_bounds = array<i64: 1, 1, 1>, scalar_prefetch = 0 : i64, scratch_operands = 0 : i64, tpu.core_type = #tpu.core_type<tc>, window_params = [{transform_indices = @transform_0, window_bounds = array<i64: 2, 8, 128>}, {transform_indices = @transform_1, window_bounds = array<i64: 2, 8, 128>}, {transform_indices = @transform_2, window_bounds = array<i64: 1, 2, 128>}, {transform_indices = @transform_3, window_bounds = array<i64: 1, 2, 128>}, {transform_indices = @transform_4, window_bounds = array<i64: 1, 2, 128>}]} {
    %c0_i32 = arith.constant 0 : i32
    %0 = arith.cmpi eq, %arg2, %c0_i32 : i32
    %1 = arith.extui %0 : i1 to i32
    %c0_i32_0 = arith.constant 0 : i32
    %2 = arith.cmpi ne, %1, %c0_i32_0 : i32
    scf.if %2 {
      %cst_10 = arith.constant 0.000000e+00 : f32
      %21 = vector.broadcast %cst_10 : f32 to vector<1x2x128xf32>
      %c0_11 = arith.constant 0 : index
      %c0_12 = arith.constant 0 : index
      %c0_13 = arith.constant 0 : index
      %22 = vector.load %arg5[%c0_11, %c0_12, %c0_13] : memref<1x2x128xf32, #tpu.memory_space<vmem>>, vector<1x2x128xf32>
      tpu.vector_store %arg5[%c0_11, %c0_12, %c0_13], %21 {strides = array<i32>} : memref<1x2x128xf32, #tpu.memory_space<vmem>>, vector<1x2x128xf32>,
      %cst_14 = arith.constant 0.000000e+00 : f32
      %23 = vector.broadcast %cst_14 : f32 to vector<1x2x128xf32>
      %c0_15 = arith.constant 0 : index
      %c0_16 = arith.constant 0 : index
      %c0_17 = arith.constant 0 : index
      %24 = vector.load %arg6[%c0_15, %c0_16, %c0_17] : memref<1x2x128xf32, #tpu.memory_space<vmem>>, vector<1x2x128xf32>
      tpu.vector_store %arg6[%c0_15, %c0_16, %c0_17], %23 {strides = array<i32>} : memref<1x2x128xf32, #tpu.memory_space<vmem>>, vector<1x2x128xf32>,
      %cst_18 = arith.constant 0.000000e+00 : f32
      %25 = vector.broadcast %cst_18 : f32 to vector<1x2x128xf32>
      %c0_19 = arith.constant 0 : index
      %c0_20 = arith.constant 0 : index
      %c0_21 = arith.constant 0 : index
      %26 = vector.load %arg7[%c0_19, %c0_20, %c0_21] : memref<1x2x128xf32, #tpu.memory_space<vmem>>, vector<1x2x128xf32>
      tpu.vector_store %arg7[%c0_19, %c0_20, %c0_21], %25 {strides = array<i32>} : memref<1x2x128xf32, #tpu.memory_space<vmem>>, vector<1x2x128xf32>,
    } else {
    }
    %c0 = arith.constant 0 : index
    %c0_1 = arith.constant 0 : index
    %c0_2 = arith.constant 0 : index
    %3 = vector.load %arg3[%c0, %c0_1, %c0_2] : memref<2x8x128xf32, #tpu.memory_space<vmem>>, vector<2x8x128xf32>
    %c0_3 = arith.constant 0 : index
    %c0_4 = arith.constant 0 : index
    %c0_5 = arith.constant 0 : index
    %4 = vector.load %arg4[%c0_3, %c0_4, %c0_5] : memref<2x8x128xf32, #tpu.memory_space<vmem>>, vector<2x8x128xf32>
    %5 = arith.negf %3 : vector<2x8x128xf32>
    %6 = math.exp %5 : vector<2x8x128xf32>
    %cst = arith.constant 1.000000e+00 : f32
    %7 = vector.broadcast %cst : f32 to vector<2x8x128xf32>
    %8 = arith.addf %7, %6 : vector<2x8x128xf32>
    %9 = arith.divf %7, %8 : vector<2x8x128xf32>
    %c1_i32 = arith.constant 1 : i32
    %10 = arith.muli %arg1, %c1_i32 : i32
    %11 = arith.addi %10, %arg2 : i32
    %c8_i32 = arith.constant 8 : i32
    %12 = arith.muli %11, %c8_i32 : i32
    %c8_i32_6 = arith.constant 8 : i32
    %13 = arith.addi %12, %c8_i32_6 : i32
    %c128_i32 = arith.constant 128 : i32
    %14 = arith.muli %13, %c128_i32 : i32
    %c1024_i32 = arith.constant 1024 : i32
    %15 = arith.cmpi sle, %14, %c1024_i32 : i32
    %16 = arith.extui %15 : i1 to i32
    %c0_i32_7 = arith.constant 0 : i32
    %17 = arith.cmpi ne, %16, %c0_i32_7 : i32
    scf.if %17 {
      %c0_10 = arith.constant 0 : index
      %c0_11 = arith.constant 0 : index
      %c0_12 = arith.constant 0 : index
      %21 = vector.load %arg5[%c0_10, %c0_11, %c0_12] : memref<1x2x128xf32, #tpu.memory_space<vmem>>, vector<1x2x128xf32>
      %22 = arith.mulf %9, %4 : vector<2x8x128xf32>
      %cst_13 = arith.constant dense<0.000000e+00> : vector<2x128xf32>
      %23 = vector.multi_reduction <add>, %22, %cst_13 [1] : vector<2x8x128xf32> to vector<2x128xf32>
      %24 = vector.shape_cast %23 : vector<2x128xf32> to vector<1x2x128xf32>
      %25 = arith.addf %21, %24 : vector<1x2x128xf32>
      %c0_14 = arith.constant 0 : index
      %c0_15 = arith.constant 0 : index
      %c0_16 = arith.constant 0 : index
      %26 = vector.load %arg5[%c0_14, %c0_15, %c0_16] : memref<1x2x128xf32, #tpu.memory_space<vmem>>, vector<1x2x128xf32>
      tpu.vector_store %arg5[%c0_14, %c0_15, %c0_16], %25 {strides = array<i32>} : memref<1x2x128xf32, #tpu.memory_space<vmem>>, vector<1x2x128xf32>,
      %c0_17 = arith.constant 0 : index
      %c0_18 = arith.constant 0 : index
      %c0_19 = arith.constant 0 : index
      %27 = vector.load %arg6[%c0_17, %c0_18, %c0_19] : memref<1x2x128xf32, #tpu.memory_space<vmem>>, vector<1x2x128xf32>
      %cst_20 = arith.constant dense<0.000000e+00> : vector<2x128xf32>
      %28 = vector.multi_reduction <add>, %9, %cst_20 [1] : vector<2x8x128xf32> to vector<2x128xf32>
      %29 = vector.shape_cast %28 : vector<2x128xf32> to vector<1x2x128xf32>
      %30 = arith.addf %27, %29 : vector<1x2x128xf32>
      %c0_21 = arith.constant 0 : index
      %c0_22 = arith.constant 0 : index
      %c0_23 = arith.constant 0 : index
      %31 = vector.load %arg6[%c0_21, %c0_22, %c0_23] : memref<1x2x128xf32, #tpu.memory_space<vmem>>, vector<1x2x128xf32>
      tpu.vector_store %arg6[%c0_21, %c0_22, %c0_23], %30 {strides = array<i32>} : memref<1x2x128xf32, #tpu.memory_space<vmem>>, vector<1x2x128xf32>,
      %c0_24 = arith.constant 0 : index
      %c0_25 = arith.constant 0 : index
      %c0_26 = arith.constant 0 : index
      %32 = vector.load %arg7[%c0_24, %c0_25, %c0_26] : memref<1x2x128xf32, #tpu.memory_space<vmem>>, vector<1x2x128xf32>
      %cst_27 = arith.constant dense<0.000000e+00> : vector<2x128xf32>
      %33 = vector.multi_reduction <add>, %4, %cst_27 [1] : vector<2x8x128xf32> to vector<2x128xf32>
      %34 = vector.shape_cast %33 : vector<2x128xf32> to vector<1x2x128xf32>
      %35 = arith.addf %32, %34 : vector<1x2x128xf32>
      %c0_28 = arith.constant 0 : index
      %c0_29 = arith.constant 0 : index
      %c0_30 = arith.constant 0 : index
      %36 = vector.load %arg7[%c0_28, %c0_29, %c0_30] : memref<1x2x128xf32, #tpu.memory_space<vmem>>, vector<1x2x128xf32>
      tpu.vector_store %arg7[%c0_28, %c0_29, %c0_30], %35 {strides = array<i32>} : memref<1x2x128xf32, #tpu.memory_space<vmem>>, vector<1x2x128xf32>,
    } else {
    }
    %c1024_i32_8 = arith.constant 1024 : i32
    %18 = arith.cmpi sgt, %14, %c1024_i32_8 : i32
    %19 = arith.extui %18 : i1 to i32
    %c0_i32_9 = arith.constant 0 : i32
    %20 = arith.cmpi ne, %19, %c0_i32_9 : i32
    scf.if %20 {
      %21 = tpu.iota {dimensions = array<i32: 1>} : vector<2x8x128xi32>
      %22 = tpu.iota {dimensions = array<i32: 2>} : vector<2x8x128xi32>
      %23 = vector.broadcast %12 : i32 to vector<2x8x128xi32>
      %24 = arith.addi %23, %21 : vector<2x8x128xi32>
      %c128_i32_10 = arith.constant 128 : i32
      %25 = vector.broadcast %c128_i32_10 : i32 to vector<2x8x128xi32>
      %26 = arith.muli %24, %25 : vector<2x8x128xi32>
      %27 = arith.addi %26, %22 : vector<2x8x128xi32>
      %c1024_i32_11 = arith.constant 1024 : i32
      %28 = vector.broadcast %c1024_i32_11 : i32 to vector<2x8x128xi32>
      %29 = arith.cmpi slt, %27, %28 : vector<2x8x128xi32>
      %cst_12 = arith.constant 0.000000e+00 : f32
      %30 = vector.broadcast %cst_12 : f32 to vector<2x8x128xf32>
      %31 = arith.select %29, %9, %30 : vector<2x8x128xi1>, vector<2x8x128xf32>
      %cst_13 = arith.constant 0.000000e+00 : f32
      %32 = vector.broadcast %cst_13 : f32 to vector<2x8x128xf32>
      %33 = arith.select %29, %4, %32 : vector<2x8x128xi1>, vector<2x8x128xf32>
      %c0_14 = arith.constant 0 : index
      %c0_15 = arith.constant 0 : index
      %c0_16 = arith.constant 0 : index
      %34 = vector.load %arg5[%c0_14, %c0_15, %c0_16] : memref<1x2x128xf32, #tpu.memory_space<vmem>>, vector<1x2x128xf32>
      %35 = arith.mulf %31, %33 : vector<2x8x128xf32>
      %cst_17 = arith.constant dense<0.000000e+00> : vector<2x128xf32>
      %36 = vector.multi_reduction <add>, %35, %cst_17 [1] : vector<2x8x128xf32> to vector<2x128xf32>
      %37 = vector.shape_cast %36 : vector<2x128xf32> to vector<1x2x128xf32>
      %38 = arith.addf %34, %37 : vector<1x2x128xf32>
      %c0_18 = arith.constant 0 : index
      %c0_19 = arith.constant 0 : index
      %c0_20 = arith.constant 0 : index
      %39 = vector.load %arg5[%c0_18, %c0_19, %c0_20] : memref<1x2x128xf32, #tpu.memory_space<vmem>>, vector<1x2x128xf32>
      tpu.vector_store %arg5[%c0_18, %c0_19, %c0_20], %38 {strides = array<i32>} : memref<1x2x128xf32, #tpu.memory_space<vmem>>, vector<1x2x128xf32>,
      %c0_21 = arith.constant 0 : index
      %c0_22 = arith.constant 0 : index
      %c0_23 = arith.constant 0 : index
      %40 = vector.load %arg6[%c0_21, %c0_22, %c0_23] : memref<1x2x128xf32, #tpu.memory_space<vmem>>, vector<1x2x128xf32>
      %cst_24 = arith.constant dense<0.000000e+00> : vector<2x128xf32>
      %41 = vector.multi_reduction <add>, %31, %cst_24 [1] : vector<2x8x128xf32> to vector<2x128xf32>
      %42 = vector.shape_cast %41 : vector<2x128xf32> to vector<1x2x128xf32>
      %43 = arith.addf %40, %42 : vector<1x2x128xf32>
      %c0_25 = arith.constant 0 : index
      %c0_26 = arith.constant 0 : index
      %c0_27 = arith.constant 0 : index
      %44 = vector.load %arg6[%c0_25, %c0_26, %c0_27] : memref<1x2x128xf32, #tpu.memory_space<vmem>>, vector<1x2x128xf32>
      tpu.vector_store %arg6[%c0_25, %c0_26, %c0_27], %43 {strides = array<i32>} : memref<1x2x128xf32, #tpu.memory_space<vmem>>, vector<1x2x128xf32>,
      %c0_28 = arith.constant 0 : index
      %c0_29 = arith.constant 0 : index
      %c0_30 = arith.constant 0 : index
      %45 = vector.load %arg7[%c0_28, %c0_29, %c0_30] : memref<1x2x128xf32, #tpu.memory_space<vmem>>, vector<1x2x128xf32>
      %cst_31 = arith.constant dense<0.000000e+00> : vector<2x128xf32>
      %46 = vector.multi_reduction <add>, %33, %cst_31 [1] : vector<2x8x128xf32> to vector<2x128xf32>
      %47 = vector.shape_cast %46 : vector<2x128xf32> to vector<1x2x128xf32>
      %48 = arith.addf %45, %47 : vector<1x2x128xf32>
      %c0_32 = arith.constant 0 : index
      %c0_33 = arith.constant 0 : index
      %c0_34 = arith.constant 0 : index
      %49 = vector.load %arg7[%c0_32, %c0_33, %c0_34] : memref<1x2x128xf32, #tpu.memory_space<vmem>>, vector<1x2x128xf32>
      tpu.vector_store %arg7[%c0_32, %c0_33, %c0_34], %48 {strides = array<i32>} : memref<1x2x128xf32, #tpu.memory_space<vmem>>, vector<1x2x128xf32>,
    } else {
    }
    return
  }
  func.func @transform_0(%arg0: i32, %arg1: i32, %arg2: i32) -> (i32, i32, i32) {
    %c1_i32 = arith.constant 1 : i32
    %0 = arith.muli %arg1, %c1_i32 : i32
    %1 = arith.addi %0, %arg2 : i32
    %c0_i32 = arith.constant 0 : i32
    %2 = arith.minsi %1, %c0_i32 : i32
    %c0_i32_0 = arith.constant 0 : i32
    %c0_i32_1 = arith.constant 0 : i32
    return %arg0, %2, %c0_i32_0 : i32, i32, i32
  }
  func.func @transform_1(%arg0: i32, %arg1: i32, %arg2: i32) -> (i32, i32, i32) {
    %c1_i32 = arith.constant 1 : i32
    %0 = arith.muli %arg1, %c1_i32 : i32
    %1 = arith.addi %0, %arg2 : i32
    %c0_i32 = arith.constant 0 : i32
    %2 = arith.minsi %1, %c0_i32 : i32
    %c0_i32_0 = arith.constant 0 : i32
    %c0_i32_1 = arith.constant 0 : i32
    return %arg0, %2, %c0_i32_0 : i32, i32, i32
  }
  func.func @transform_2(%arg0: i32, %arg1: i32, %arg2: i32) -> (i32, i32, i32) {
    %c0_i32 = arith.constant 0 : i32
    %c0_i32_0 = arith.constant 0 : i32
    return %arg1, %arg0, %c0_i32 : i32, i32, i32
  }
  func.func @transform_3(%arg0: i32, %arg1: i32, %arg2: i32) -> (i32, i32, i32) {
    %c0_i32 = arith.constant 0 : i32
    %c0_i32_0 = arith.constant 0 : i32
    return %arg1, %arg0, %c0_i32 : i32, i32, i32
  }
  func.func @transform_4(%arg0: i32, %arg1: i32, %arg2: i32) -> (i32, i32, i32) {
    %c0_i32 = arith.constant 0 : i32
    %c0_i32_0 = arith.constant 0 : i32
    return %arg1, %arg0, %c0_i32 : i32, i32, i32
  }
}

</mosaic_0001>

<llo_original>
// kernel: tpu_custom_call.1
$region0: #{tpu_custom_call.1}
  #allocation0 [shape = 'u32[]', space=smem, size = 0x4, offset = 0x4, fixed_abs, tag = 'smem constant byte address 0x4 - core index']
  #allocation1 [shape = 'u32[72,128]{1,0:T(1,128)}', space=vmem, size = 0x9000, scoped, tag = 'internal scratch']
  %s0 = inlined_call_operand.hbm [shape: f32[2,8,128], index: 0, kind: input, shape index: {}]
  %s1 = inlined_call_operand.hbm [shape: f32[2,8,128], index: 1, kind: input, shape index: {}]
  %s2 = inlined_call_operand.hbm [shape: f32[1,2,128], index: 2, kind: output, shape index: {0}]
  %s3 = inlined_call_operand.hbm [shape: f32[1,2,128], index: 3, kind: output, shape index: {1}]
  %s4 = inlined_call_operand.hbm [shape: f32[1,2,128], index: 4, kind: output, shape index: {2}]
  %5 = xla_tuple %s2, %s3, %s4
  %s6 = sld [smem:[#allocation0]]
  $region54: #{tpu_custom_call.1} parent=0
    _
  %s8 = ssub.s32 1, %s6
  %s9 = scalar_select 0, %s8, %s6
  $region1: #{tpu_custom_call.1} parent=0
    #allocation2 [shape = 'u8[8192]{0}', space=vmem, size = 0x2000, scoped, tag = 'input window, operand 0, single buffered']
    #allocation3 [shape = 's32[1]{0}', space=sflag, size = 0x4, scoped, tag = 'scoped memory for tpu_custom_call.1']
    #allocation4 [shape = 's32[1]{0}', space=sflag, size = 0x4, scoped, tag = 'scoped memory for tpu_custom_call.1']
    #allocation5 [shape = 'u8[8192]{0}', space=vmem, size = 0x2000, scoped, tag = 'input window, operand 1, single buffered']
    #allocation6 [shape = 's32[1]{0}', space=sflag, size = 0x4, scoped, tag = 'scoped memory for tpu_custom_call.1']
    #allocation7 [shape = 'u8[1024]{0}', space=vmem, size = 0x400, scoped, tag = 'output window, operand 0, single buffered']
    #allocation8 [shape = 'u8[1024]{0}', space=vmem, size = 0x400, scoped, tag = 'output window, operand 1, single buffered']
    #allocation9 [shape = 's32[1]{0}', space=sflag, size = 0x4, scoped, tag = 'scoped memory for tpu_custom_call.1']
    #allocation10 [shape = 'u8[1024]{0}', space=vmem, size = 0x400, scoped, tag = 'output window, operand 2, single buffered']
    %10 = vsyncpa [#allocation3], 0
    %11 = vsyncpa [#allocation6], 0
    %12 = vsyncpa [#allocation4], 0
    %13 = vsyncpa [#allocation9], 0
    // Predicated region
    $region2: #{tpu_custom_call.1} parent=1 // pred_check
      _
    $region3: #{tpu_custom_call.1} parent=1 // pred_check_branch
      %15 = sbr.rel (0) target = $region5
    $region4: #{tpu_custom_call.1} parent=1 // pred_region
      %s16 = sadd.s32 0, 0
      %p17 = scmp.lt.s32.totalorder %s16, 0
      %s18 = scalar_select %p17, %s16, 0
      %20 = vsyncadd [#allocation3], 0
      %s21 = smul.addr %s18, 8
      %s22 = scalar_lea.hbm %s0, %s21
      %s23 = sshll.u32 %s22, 4
      %s24 = int_to_ptr.hbm [resolvable:$true] %s23
      %s25 = sshll.u32 [#allocation2], 4
      %s26 = int_to_ptr.vmem [resolvable:$true] %s25
      %31 = dma.hbm_to_vmem [thread:$0]  %s24, 256, %s26, [#allocation3], 128, 128, 8
    $region5: #{tpu_custom_call.1} parent=1 // pred_fallthru
      _
    // Predicated region
    $region6: #{tpu_custom_call.1} parent=1 // pred_check
      _
    $region7: #{tpu_custom_call.1} parent=1 // pred_check_branch
      %33 = sbr.rel (0) target = $region9
    $region8: #{tpu_custom_call.1} parent=1 // pred_region
      %s34 = sadd.s32 0, 0
      %p35 = scmp.lt.s32.totalorder %s34, 0
      %s36 = scalar_select %p35, %s34, 0
      %38 = vsyncadd [#allocation6], 0
      %s39 = smul.addr %s36, 8
      %s40 = scalar_lea.hbm %s1, %s39
      %s41 = sshll.u32 %s40, 4
      %s42 = int_to_ptr.hbm [resolvable:$true] %s41
      %s43 = sshll.u32 [#allocation5], 4
      %s44 = int_to_ptr.vmem [resolvable:$true] %s43
      %49 = dma.hbm_to_vmem [thread:$0]  %s42, 256, %s44, [#allocation6], 128, 128, 8
    $region9: #{tpu_custom_call.1} parent=1 // pred_fallthru
      _
    // Predicated region
    $region10: #{tpu_custom_call.1} parent=1 // pred_check
      _
    $region11: #{tpu_custom_call.1} parent=1 // pred_check_branch
      %51 = sbr.rel (0) target = $region13
    $region12: #{tpu_custom_call.1} parent=1 // pred_region
      %53 = dma.done [#allocation3], 256
    $region13: #{tpu_custom_call.1} parent=1 // pred_fallthru
      _
    // Predicated region
    $region14: #{tpu_custom_call.1} parent=1 // pred_check
      _
    $region15: #{tpu_custom_call.1} parent=1 // pred_check_branch
      %55 = sbr.rel (0) target = $region17
    $region16: #{tpu_custom_call.1} parent=1 // pred_region
      %57 = dma.done [#allocation6], 256
    $region17: #{tpu_custom_call.1} parent=1 // pred_fallthru
      _
    %s58 = sadd.s32 0, 0
    %p59 = scmp.lt.s32.totalorder %s58, 0
    %s60 = scalar_select %p59, %s58, 0
    %s61 = sadd.s32 0, 0
    %p62 = scmp.lt.s32.totalorder %s61, 0
    %s63 = scalar_select %p62, %s61, 0
    %p64 = scmp.eq.s32.totalorder 0, 0
    // Predicated region
    $region18: #{tpu_custom_call.1} parent=1 // pred_check
      %p65 = pneg %p64
    $region19: #{tpu_custom_call.1} parent=1 // pred_check_branch
      %67 = sbr.rel (%p65) target = $region21
    $region20: #{tpu_custom_call.1} parent=1 // pred_region
      %68 = vst [vmem:[#allocation7] sm:$0x3] 0.0
      %69 = vst [vmem:[#allocation8] sm:$0x3] 0.0
      %70 = vst [vmem:[#allocation10] sm:$0x3] 0.0
    $region21: #{tpu_custom_call.1} parent=1 // pred_fallthru
      _
    %v71 = vld [vmem:[#allocation2] sm:$0xff]
    %v72 = vld [vmem:[#allocation2 + $0x8] sm:$0xff]
    %v73 = vld [vmem:[#allocation5] sm:$0xff]
    %v74 = vld [vmem:[#allocation5 + $0x8] sm:$0xff]
    %v75 = vxor.u32 %v71, 2147483648
    %v76 = vxor.u32 %v72, 2147483648
    %v77 = vmul.f32 %v75, 1.442695
    %v78 = vpow.pop %v77
    %v79 = vmul.f32 %v76, 1.442695
    %v80 = vpow.pop %v79
    %v81 = vadd.f32 %v78, 1.0
    %v82 = vadd.f32 %v80, 1.0
    %v83 = vrcp.pop %v81
    %v84 = vmul.f32 %v81, %v83
    %v85 = vsub.f32 1.0, %v84
    %v86 = vmul.f32 %v83, %v85
    %v87 = vadd.f32 %v83, %v86
    %vm88 = vweird.f32 %v81
    %vm89 = vweird.f32 %v83
    %vm90 = vmor %vm88, %vm89
    %v91 = vsel %vm90, %v83, %v87
    %v92 = vand.u32 2147483647, %v81
    %vm93 = vcmp.eq.f32.partialorder %v92, 8.507059e+37
    %v94 = vand.u32 %v81, 2147483648
    %v95 = vor.u32 1.1754944e-38, %v94
    %v96 = vsel %vm93, %v95, %v91
    %v97 = vmul.f32 1.0, %v96
    %v98 = vrcp.pop %v82
    %v99 = vmul.f32 %v82, %v98
    %v100 = vsub.f32 1.0, %v99
    %v101 = vmul.f32 %v98, %v100
    %v102 = vadd.f32 %v98, %v101
    %vm103 = vweird.f32 %v82
    %vm104 = vweird.f32 %v98
    %vm105 = vmor %vm103, %vm104
    %v106 = vsel %vm105, %v98, %v102
    %v107 = vand.u32 2147483647, %v82
    %vm108 = vcmp.eq.f32.partialorder %v107, 8.507059e+37
    %v109 = vand.u32 %v82, 2147483648
    %v110 = vor.u32 1.1754944e-38, %v109
    %v111 = vsel %vm108, %v110, %v106
    %v112 = vmul.f32 1.0, %v111
    %s113 = sadd.s32 0, 0
    %s114 = smul.u32 %s113, 8
    %s115 = sadd.s32 %s114, 8
    %s116 = smul.u32 %s115, 128
    %p117 = scmp.le.s32.totalorder %s116, 1024
    // Predicated region
    $region22: #{tpu_custom_call.1} parent=1 // pred_check
      %p118 = pneg %p117
    $region23: #{tpu_custom_call.1} parent=1 // pred_check_branch
      %120 = sbr.rel (%p118) target = $region25
    $region24: #{tpu_custom_call.1} parent=1 // pred_region
      %v121 = vld [vmem:[#allocation7] sm:$0x3]
      %v122 = vmul.f32 %v97, %v73
      %v123 = vmul.f32 %v112, %v74
      %v124 = vrot.slane %v122, 4
      %v125 = vadd.f32 %v122, %v124
      %v126 = vrot.slane %v125, 2
      %v127 = vadd.f32 %v125, %v126
      %v128 = vrot.slane %v127, 1
      %v129 = vadd.f32 %v127, %v128
      %v130 = vrot.slane %v123, 4
      %v131 = vadd.f32 %v123, %v130
      %v132 = vrot.slane %v131, 2
      %v133 = vadd.f32 %v131, %v132
      %v134 = vrot.slane %v133, 1
      %v135 = vadd.f32 %v133, %v134
      %vm138 = vcmask 1041409
      %v139 = vsel %vm138, %v135, %v129
      %v141 = vadd.f32 %v121, %v139
      %142 = vst [vmem:[#allocation7] sm:$0x3] %v141
      %v143 = vld [vmem:[#allocation8] sm:$0x3]
      %v144 = vrot.slane %v97, 4
      %v145 = vadd.f32 %v97, %v144
      %v146 = vrot.slane %v145, 2
      %v147 = vadd.f32 %v145, %v146
      %v148 = vrot.slane %v147, 1
      %v149 = vadd.f32 %v147, %v148
      %v150 = vrot.slane %v112, 4
      %v151 = vadd.f32 %v112, %v150
      %v152 = vrot.slane %v151, 2
      %v153 = vadd.f32 %v151, %v152
      %v154 = vrot.slane %v153, 1
      %v155 = vadd.f32 %v153, %v154
      %v158 = vsel %vm138, %v155, %v149
      %v160 = vadd.f32 %v143, %v158
      %161 = vst [vmem:[#allocation8] sm:$0x3] %v160
      %v162 = vld [vmem:[#allocation10] sm:$0x3]
      %v163 = vrot.slane %v73, 4
      %v164 = vadd.f32 %v73, %v163
      %v165 = vrot.slane %v164, 2
      %v166 = vadd.f32 %v164, %v165
      %v167 = vrot.slane %v166, 1
      %v168 = vadd.f32 %v166, %v167
      %v169 = vrot.slane %v74, 4
      %v170 = vadd.f32 %v74, %v169
      %v171 = vrot.slane %v170, 2
      %v172 = vadd.f32 %v170, %v171
      %v173 = vrot.slane %v172, 1
      %v174 = vadd.f32 %v172, %v173
      %v177 = vsel %vm138, %v174, %v168
      %v179 = vadd.f32 %v162, %v177
      %180 = vst [vmem:[#allocation10] sm:$0x3] %v179
    $region25: #{tpu_custom_call.1} parent=1 // pred_fallthru
      _
    %p181 = scmp.gt.s32.totalorder %s116, 1024
    // Predicated region
    $region26: #{tpu_custom_call.1} parent=1 // pred_check
      %p182 = pneg %p181
    $region27: #{tpu_custom_call.1} parent=1 // pred_check_branch
      %184 = sbr.rel (%p182) target = $region29
    $region28: #{tpu_custom_call.1} parent=1 // pred_region
      %v185 = vlaneseq
      %v186 = vshrl.u32 %v185, 7
      %v187 = vlaneseq
      %v188 = vand.u32 %v187, 127
      %v189 = vstv %s114
      %v190 = vadd.s32 %v189, %v186
      %v191 = vmul.u32 %v190, 128
      %v192 = vadd.s32 %v191, %v188
      %vm193 = vcmp.lt.s32.totalorder %v192, 1024
      %v194 = vsel %vm193, %v97, 0.0
      %v195 = vsel %vm193, %v112, 0.0
      %v196 = vsel %vm193, %v73, 0.0
      %v197 = vsel %vm193, %v74, 0.0
      %v198 = vld [vmem:[#allocation7] sm:$0x3]
      %v199 = vmul.f32 %v194, %v196
      %v200 = vmul.f32 %v195, %v197
      %v201 = vrot.slane %v199, 4
      %v202 = vadd.f32 %v199, %v201
      %v203 = vrot.slane %v202, 2
      %v204 = vadd.f32 %v202, %v203
      %v205 = vrot.slane %v204, 1
      %v206 = vadd.f32 %v204, %v205
      %v207 = vrot.slane %v200, 4
      %v208 = vadd.f32 %v200, %v207
      %v209 = vrot.slane %v208, 2
      %v210 = vadd.f32 %v208, %v209
      %v211 = vrot.slane %v210, 1
      %v212 = vadd.f32 %v210, %v211
      %vm215 = vcmask 1041409
      %v216 = vsel %vm215, %v212, %v206
      %v218 = vadd.f32 %v198, %v216
      %219 = vst [vmem:[#allocation7] sm:$0x3] %v218
      %v220 = vld [vmem:[#allocation8] sm:$0x3]
      %v221 = vrot.slane %v194, 4
      %v222 = vadd.f32 %v194, %v221
      %v223 = vrot.slane %v222, 2
      %v224 = vadd.f32 %v222, %v223
      %v225 = vrot.slane %v224, 1
      %v226 = vadd.f32 %v224, %v225
      %v227 = vrot.slane %v195, 4
      %v228 = vadd.f32 %v195, %v227
      %v229 = vrot.slane %v228, 2
      %v230 = vadd.f32 %v228, %v229
      %v231 = vrot.slane %v230, 1
      %v232 = vadd.f32 %v230, %v231
      %v235 = vsel %vm215, %v232, %v226
      %v237 = vadd.f32 %v220, %v235
      %238 = vst [vmem:[#allocation8] sm:$0x3] %v237
      %v239 = vld [vmem:[#allocation10] sm:$0x3]
      %v240 = vrot.slane %v196, 4
      %v241 = vadd.f32 %v196, %v240
      %v242 = vrot.slane %v241, 2
      %v243 = vadd.f32 %v241, %v242
      %v244 = vrot.slane %v243, 1
      %v245 = vadd.f32 %v243, %v244
      %v246 = vrot.slane %v197, 4
      %v247 = vadd.f32 %v197, %v246
      %v248 = vrot.slane %v247, 2
      %v249 = vadd.f32 %v247, %v248
      %v250 = vrot.slane %v249, 1
      %v251 = vadd.f32 %v249, %v250
      %v254 = vsel %vm215, %v251, %v245
      %v256 = vadd.f32 %v239, %v254
      %257 = vst [vmem:[#allocation10] sm:$0x3] %v256
    $region29: #{tpu_custom_call.1} parent=1 // pred_fallthru
      _
    // Predicated region
    $region30: #{tpu_custom_call.1} parent=1 // pred_check
      _
    $region31: #{tpu_custom_call.1} parent=1 // pred_check_branch
      %259 = sbr.rel (0) target = $region33
    $region32: #{tpu_custom_call.1} parent=1 // pred_region
      %261 = vsyncadd [#allocation4], 0
      %s263 = sshll.u32 [#allocation7], 4
      %s264 = int_to_ptr.vmem [resolvable:$true] %s263
      %s265 = sshll.u32 %s2, 4
      %s266 = int_to_ptr.hbm [resolvable:$true] %s265
      %268 = dma.vmem_to_hbm [thread:$0]  %s264, 32, %s266, [#allocation4]
    $region33: #{tpu_custom_call.1} parent=1 // pred_fallthru
      _
    // Predicated region
    $region34: #{tpu_custom_call.1} parent=1 // pred_check
      _
    $region35: #{tpu_custom_call.1} parent=1 // pred_check_branch
      %270 = sbr.rel (0) target = $region37
    $region36: #{tpu_custom_call.1} parent=1 // pred_region
      %272 = vsyncadd [#allocation9], 0
      %s274 = sshll.u32 [#allocation8], 4
      %s275 = int_to_ptr.vmem [resolvable:$true] %s274
      %s276 = sshll.u32 %s3, 4
      %s277 = int_to_ptr.hbm [resolvable:$true] %s276
      %279 = dma.vmem_to_hbm [thread:$0]  %s275, 32, %s277, [#allocation9]
    $region37: #{tpu_custom_call.1} parent=1 // pred_fallthru
      _
    // Predicated region
    $region38: #{tpu_custom_call.1} parent=1 // pred_check
      _
    $region39: #{tpu_custom_call.1} parent=1 // pred_check_branch
      %281 = sbr.rel (0) target = $region41
    $region40: #{tpu_custom_call.1} parent=1 // pred_region
      %283 = vsyncadd [#allocation9], 0
      %s285 = sshll.u32 [#allocation10], 4
      %s286 = int_to_ptr.vmem [resolvable:$true] %s285
      %s287 = sshll.u32 %s4, 4
      %s288 = int_to_ptr.hbm [resolvable:$true] %s287
      %290 = dma.vmem_to_hbm [thread:$0]  %s286, 32, %s288, [#allocation9]
    $region41: #{tpu_custom_call.1} parent=1 // pred_fallthru
      _
    // Predicated region
    $region42: #{tpu_custom_call.1} parent=1 // pred_check
      _
    $region43: #{tpu_custom_call.1} parent=1 // pred_check_branch
      %292 = sbr.rel (0) target = $region45
    $region44: #{tpu_custom_call.1} parent=1 // pred_region
      %294 = dma.done [#allocation4], 32
    $region45: #{tpu_custom_call.1} parent=1 // pred_fallthru
      _
    // Predicated region
    $region46: #{tpu_custom_call.1} parent=1 // pred_check
      _
    $region47: #{tpu_custom_call.1} parent=1 // pred_check_branch
      %296 = sbr.rel (0) target = $region49
    $region48: #{tpu_custom_call.1} parent=1 // pred_region
      %298 = dma.done [#allocation9], 32
    $region49: #{tpu_custom_call.1} parent=1 // pred_fallthru
      _
    // Predicated region
    $region50: #{tpu_custom_call.1} parent=1 // pred_check
      _
    $region51: #{tpu_custom_call.1} parent=1 // pred_check_branch
      %300 = sbr.rel (0) target = $region53
    $region52: #{tpu_custom_call.1} parent=1 // pred_region
      %302 = dma.done [#allocation9], 32
    $region53: #{tpu_custom_call.1} parent=1 // pred_fallthru
      _
    %303 = vsyncpa [#allocation3], 1
    %304 = vsyncpa [#allocation6], 1
    %305 = vsyncpa [#allocation4], 1
    %306 = vsyncpa [#allocation9], 1

</llo_original>
